<compile_context>
chip_gen: v6e
topology: v6e:2x2x1
jax: 0.10.0
libtpu: 0.0.40
codegen_flags: <defaults>
</compile_context>

<pallas_src>
import math

import jax
import jax.numpy as jnp
from jax import lax
from jax.experimental import pallas as pl
from jax.experimental.pallas import tpu as pltpu


# ----------------------------------------------------------------------------- kernels


def _row_scale_kernel(w_ref, g_ref, o_ref, ssq_ref):
    """scale[n] = g[n] * rsqrt(sum_k w[n,k]^2), K-tiled reduction.

    grid = (Np/tn, Kp/tk)
      w_ref  : (tn, tk)  weight tile (matmul dtype)
      g_ref  : (tn, 1)   weight_g (f32)
      o_ref  : (tn, 1)   scale out (f32)
      ssq_ref: (tn, 1)   f32 accumulator scratch
    """
    k = pl.program_id(1)

    @pl.when(k == 0)
    def _():
        ssq_ref[...] = jnp.zeros_like(ssq_ref)

    w = w_ref[...].astype(jnp.float32)
    ssq_ref[...] += jnp.sum(w * w, axis=1, keepdims=True)

    @pl.when(k == pl.num_programs(1) - 1)
    def _():
        # rsqrt -> EUP slot.  No epsilon: matches PyTorch weight_norm semantics (an
        # all-zero weight row would be NaN there too); Xavier init precludes zero rows.
        o_ref[...] = g_ref[...] * lax.rsqrt(ssq_ref[...])


def _wnl_matmul_kernel_f32out(x_ref, w_ref, scale_ref, b_ref, o_ref):
    """y = (x @ w.T) * scale + bias, accumulating directly into the resident f32 output tile.

    grid = (M/tm, N/tn, K/tk)
      x_ref    : (tm, tk)  input tile (matmul dtype)
      w_ref    : (tn, tk)  weight tile (matmul dtype, NOT rescaled)
      scale_ref: (1,  tn)  g/||w||  (f32)
      b_ref    : (1,  tn)  bias     (f32)
      o_ref    : (tm, tn)  f32 output tile (resident across the K axis)
    """
    k = pl.program_id(2)

    @pl.when(k == 0)
    def _():
        o_ref[...] = jnp.zeros_like(o_ref)

    # Contract last dims of both operands (x @ w.T) -- no explicit transpose needed.
    o_ref[...] += lax.dot_general(
        x_ref[...],
        w_ref[...],
        dimension_numbers=(((1,), (1,)), ((), ())),
        preferred_element_type=jnp.float32,
    )

    @pl.when(k == pl.num_programs(2) - 1)
    def _():
        o_ref[...] = o_ref[...] * scale_ref[...] + b_ref[...]


def _wnl_matmul_kernel_acc(x_ref, w_ref, scale_ref, b_ref, o_ref, acc_ref):
    """Same as above but with an explicit f32 scratch accumulator (non-f32 output dtype)."""
    k = pl.program_id(2)

    @pl.when(k == 0)
    def _():
        acc_ref[...] = jnp.zeros_like(acc_ref)

    acc_ref[...] += lax.dot_general(
        x_ref[...],
        w_ref[...],
        dimension_numbers=(((1,), (1,)), ((), ())),
        preferred_element_type=jnp.float32,
    )

    @pl.when(k == pl.num_programs(2) - 1)
    def _():
        o_ref[...] = (acc_ref[...] * scale_ref[...] + b_ref[...]).astype(o_ref.dtype)


# ----------------------------------------------------------------------------- wrapper


def _round_up(x, m):
    return ((x + m - 1) // m) * m


def _pick_tile(dim, candidates):
    """Tile minimizing padded extent; among near-ties (<= +12.5%) take the largest tile
    (bigger tiles amortize the ~0.35us/step overhead and improve x/w reuse)."""
    padded = {c: _round_up(dim, c) for c in candidates}
    best = min(padded.values())
    ok = [c for c in candidates if padded[c] <= best + best // 8]
    return max(ok)


_M_TILES = (512, 384, 256, 128, 64, 32, 16, 8)
_N_TILES = (512, 384, 256, 128)
_K_TILES = (512, 256)


def weight_norm_linear(
    x,
    weight,
    weight_g,
    bias=None,
    *,
    tm=512,
    tn=512,
    tk=512,
    use_bf16_matmul=None,
):
    """x: (B, in); weight: (out, in); weight_g: (out, 1) or (out,); bias: (out,) or None."""
    out_dtype = x.dtype
    B, K = x.shape
    N, K_w = weight.shape
    assert K_w == K, "weight.shape[1] must match x.shape[1]"

    # bf16 MXU operands by default for f32 inputs (f32 accumulation + f32 scale/bias).
    if use_bf16_matmul is None:
        use_bf16_matmul = out_dtype == jnp.float32
    mm_dtype = jnp.bfloat16 if use_bf16_matmul else out_dtype
    bytes_mm = jnp.dtype(mm_dtype).itemsize
    bytes_out = jnp.dtype(out_dtype).itemsize

    # --- tile selection ---------------------------------------------------------------
    tm_e = _pick_tile(B, [c for c in _M_TILES if c <= tm] or [_M_TILES[-1]])
    tn_e = _pick_tile(N, [c for c in _N_TILES if c <= tn] or [_N_TILES[-1]])
    Mp = _round_up(B, tm_e)
    Np = _round_up(N, tn_e)

    # Single K grid step whenever the padded K fits the VMEM budget: no reduction-axis
    # pipelining / accumulator revisits at all (e.g. small-K layers like the demo).
    K128 = _round_up(K, 128)
    single_k_max = 2048 if bytes_mm <= 2 else 1024
    if K128 <= single_k_max:
        tk_e = Kp = K128
    else:
        tk_e = _pick_tile(K, [c for c in _K_TILES if c <= tk] or [_K_TILES[-1]])
        Kp = _round_up(K, tk_e)

    # v7x megacore guard: avoid a 1x1 (i,j) grid at small batch so both TensorCores get
    # work (no effect on v5e/v6e, single TC).
    if Mp // tm_e == 1 and Np // tn_e == 1 and Np >= 256:
        half = Np // 2
        tn_e = half if half % 128 == 0 else 128

    # --- pad (cast to the matmul dtype FIRST so padded copies are half-size) -----------
    x_mm = x.astype(mm_dtype)
    if (Mp, Kp) != (B, K):
        x_mm = jnp.pad(x_mm, ((0, Mp - B), (0, Kp - K)))  # zeros: exact for the matmul

    w_mm = weight.astype(mm_dtype)
    if Kp != K:
        # Zero K-pad FIRST: no effect on row norms or the dot.
        w_mm = jnp.pad(w_mm, ((0, 0), (0, Kp - K)))
    if Np != N:
        # THEN pad extra output rows with 1.0 (nonzero norm) while g is padded with 0,
        # so padded rows get a finite scale of exactly 0.  Keep this ordering.
        w_mm = jnp.pad(w_mm, ((0, Np - N), (0, 0)), constant_values=1.0)

    g_p = weight_g.astype(jnp.float32).reshape(N, 1)
    if Np != N:
        g_p = jnp.pad(g_p, ((0, Np - N), (0, 0)))

    if bias is None:
        b_p = jnp.zeros((1, Np), jnp.float32)
    else:
        b_p = bias.astype(jnp.float32).reshape(1, N)
        if Np != N:
            b_p = jnp.pad(b_p, ((0, 0), (0, Np - N)))

    # --- 1) one-shot row-scale: stream the weight once at large tiles -------------------
    # TODO(synk): for decode-like shapes (single M block) the row-norm could be fused into
    # the matmul epilogue to save this extra weight read; kept separate so the matmul
    # kernel reads the weight exactly once regardless of M.
    if Np <= 1024:
        tn_s = Np
    else:
        tn_s = next(c for c in (1024, 512, 384, 256, 128) if Np % c == 0)
    tk_s = Kp if tn_s * Kp * bytes_mm <= (8 << 20) else tk_e

    fp_scale = 2 * tn_s * tk_s * bytes_mm + 6 * tn_s * 4 + tn_s * 4
    scale_col = pl.pallas_call(
        _row_scale_kernel,
        out_shape=jax.ShapeDtypeStruct((Np, 1), jnp.float32),
        grid_spec=pltpu.PrefetchScalarGridSpec(
            num_scalar_prefetch=0,
            grid=(Np // tn_s, Kp // tk_s),
            in_specs=[
                pl.BlockSpec((tn_s, tk_s), lambda n, k: (n, k)),
                pl.BlockSpec((tn_s, 1), lambda n, k: (n, 0)),
            ],
            out_specs=pl.BlockSpec((tn_s, 1), lambda n, k: (n, 0)),
            scratch_shapes=[pltpu.VMEM((tn_s, 1), jnp.float32)],
        ),
        compiler_params=pltpu.CompilerParams(
            dimension_semantics=("parallel", "arbitrary"),
            vmem_limit_bytes=int(min(48 << 20, max(16 << 20, 2 * fp_scale))),
        ),
    )(w_mm, g_p)
    scale_row = scale_col.reshape(1, Np)  # lane-dense layout for the epilogue broadcast

    # --- 2) tiled matmul with scale+bias epilogue ---------------------------------------
    needs_acc = out_dtype != jnp.float32
    fp = 2 * (tm_e + tn_e) * tk_e * bytes_mm  # double-buffered x, w tiles
    fp += 4 * tn_e * 4                        # double-buffered scale + bias tiles (f32)
    fp += 2 * tm_e * tn_e * bytes_out         # double-buffered output tile
    if needs_acc:
        fp += tm_e * tn_e * 4                 # f32 scratch accumulator
    # Footprint + headroom, capped at 48 MiB so it is safe on v7x (64 MiB physical VMEM).
    vmem_limit = int(min(48 << 20, max(16 << 20, 2 * fp + (2 << 20))))

    if needs_acc:
        kernel = _wnl_matmul_kernel_acc
        scratch = (pltpu.VMEM((tm_e, tn_e), jnp.float32),)
    else:
        kernel = _wnl_matmul_kernel_f32out  # accumulate directly into the resident f32 output
        scratch = ()

    out_p = pl.pallas_call(
        kernel,
        out_shape=jax.ShapeDtypeStruct((Mp, Np), out_dtype),
        grid_spec=pltpu.PrefetchScalarGridSpec(
            num_scalar_prefetch=0,
            grid=(Mp // tm_e, Np // tn_e, Kp // tk_e),
            in_specs=[
                pl.BlockSpec((tm_e, tk_e), lambda i, j, k: (i, k)),
                pl.BlockSpec((tn_e, tk_e), lambda i, j, k: (j, k)),
                pl.BlockSpec((1, tn_e), lambda i, j, k: (0, j)),
                pl.BlockSpec((1, tn_e), lambda i, j, k: (0, j)),
            ],
            out_specs=pl.BlockSpec((tm_e, tn_e), lambda i, j, k: (i, j)),
            scratch_shapes=scratch,
        ),
        compiler_params=pltpu.CompilerParams(
            dimension_semantics=("parallel", "parallel", "arbitrary"),
            vmem_limit_bytes=vmem_limit,
        ),
    )(x_mm, w_mm, scale_row, b_p)

    return out_p[:B, :N]


# ----------------------------------------------------------------------------- init


def init_params(key, in_features, out_features, dtype=jnp.float32):
    # Mirrors WeightNormLinear.reset_parameters():
    #   xavier_uniform_(weight); weight_g = 1; bias = 0
    limit = math.sqrt(6.0 / (in_features + out_features))
    weight = jax.random.uniform(
        key, (out_features, in_features), dtype=dtype, minval=-limit, maxval=limit
    )
    weight_g = jnp.ones((out_features, 1), dtype=dtype)
    bias = jnp.zeros((out_features,), dtype=dtype)
    return weight, weight_g, bias


# ----------------------------------------------------------------------------- demo


if __name__ == "__main__":
    batch = 64
    in_features = 192
    out_features = 320

    key = jax.random.PRNGKey(0)
    k_w, k_x, k_g, k_b = jax.random.split(key, 4)

    weight, weight_g, bias = init_params(k_w, in_features, out_features)
    # Perturb g and bias so the scale/bias epilogue is actually exercised.
    weight_g = weight_g + 0.1 * jax.random.normal(k_g, weight_g.shape, dtype=jnp.float32)
    bias = 0.1 * jax.random.normal(k_b, bias.shape, dtype=jnp.float32)
    x = jax.random.normal(k_x, (batch, in_features), dtype=jnp.float32)

    # Pure-JAX reference (PyTorch forward semantics).
    norm = jnp.linalg.norm(weight, axis=1, keepdims=True)
    w_eff = weight_g * weight / norm
    ref = x @ w_eff.T + bias

    # Default path: bf16 MXU operands, f32 accumulation + f32 scale/bias epilogue.
    out = jax.block_until_ready(weight_norm_linear(x, weight, weight_g, bias))
    assert out.shape == ref.shape and out.dtype == ref.dtype
    assert jnp.allclose(out, ref, atol=5e-2, rtol=5e-2), "bf16 path mismatch vs reference"

    # Exact f32-operand MXU path.
    out_f32 = jax.block_until_ready(
        weight_norm_linear(x, weight, weight_g, bias, use_bf16_matmul=False)
    )
    assert jnp.allclose(out_f32, ref, atol=1e-4, rtol=1e-4), "f32 path mismatch vs reference"

    # bias=None path (module constructed with bias=False).
    out_nb = jax.block_until_ready(weight_norm_linear(x, weight, weight_g, None))
    assert jnp.allclose(out_nb, ref - bias, atol=5e-2, rtol=5e-2), "no-bias path mismatch"

    print("KERNEL_OK")
</pallas_src>

<mosaic_0001>
module attributes {stable_mosaic.version = 11 : i64} {
  func.func @_row_scale_kernel(%arg0: i32, %arg1: i32, %arg2: memref<384x256xbf16, #tpu.memory_space<vmem>>, %arg3: memref<384x1xf32, #tpu.memory_space<vmem>>, %arg4: memref<384x1xf32, #tpu.memory_space<vmem>>, %arg5: memref<384x1xf32, #tpu.memory_space<vmem>>) attributes {dimension_semantics = [#tpu.dimension_semantics<parallel>, #tpu.dimension_semantics<arbitrary>], iteration_bounds = array<i64: 1, 1>, scalar_prefetch = 0 : i64, scratch_operands = 1 : i64, tpu.core_type = #tpu.core_type<tc>, window_params = [{transform_indices = @transform_0, window_bounds = array<i64: 384, 256>}, {transform_indices = @transform_1, window_bounds = array<i64: 384, 1>}, {transform_indices = @transform_2, window_bounds = array<i64: 384, 1>}]} {
    %c0_i32 = arith.constant 0 : i32
    %0 = arith.cmpi eq, %arg1, %c0_i32 : i32
    %1 = arith.extui %0 : i1 to i32
    %c0_i32_0 = arith.constant 0 : i32
    %2 = arith.cmpi ne, %1, %c0_i32_0 : i32
    scf.if %2 {
      %cst_8 = arith.constant 0.000000e+00 : f32
      %14 = vector.broadcast %cst_8 : f32 to vector<384x1xf32>
      %c0_9 = arith.constant 0 : index
      %c0_10 = arith.constant 0 : index
      %15 = vector.load %arg5[%c0_9, %c0_10] : memref<384x1xf32, #tpu.memory_space<vmem>>, vector<384x1xf32>
      tpu.vector_store %arg5[%c0_9, %c0_10], %14 {strides = array<i32>} : memref<384x1xf32, #tpu.memory_space<vmem>>, vector<384x1xf32>,
    } else {
    }
    %c0 = arith.constant 0 : index
    %c0_1 = arith.constant 0 : index
    %3 = vector.load %arg2[%c0, %c0_1] : memref<384x256xbf16, #tpu.memory_space<vmem>>, vector<384x256xbf16>
    %4 = arith.extf %3 : vector<384x256xbf16> to vector<384x256xf32>
    %c0_2 = arith.constant 0 : index
    %c0_3 = arith.constant 0 : index
    %5 = vector.load %arg5[%c0_2, %c0_3] : memref<384x1xf32, #tpu.memory_space<vmem>>, vector<384x1xf32>
    %6 = arith.mulf %4, %4 : vector<384x256xf32>
    %cst = arith.constant dense<0.000000e+00> : vector<384xf32>
    %7 = vector.multi_reduction <add>, %6, %cst [1] : vector<384x256xf32> to vector<384xf32>
    %8 = vector.shape_cast %7 : vector<384xf32> to vector<384x1xf32>
    %9 = arith.addf %5, %8 : vector<384x1xf32>
    %c0_4 = arith.constant 0 : index
    %c0_5 = arith.constant 0 : index
    %10 = vector.load %arg5[%c0_4, %c0_5] : memref<384x1xf32, #tpu.memory_space<vmem>>, vector<384x1xf32>
    tpu.vector_store %arg5[%c0_4, %c0_5], %9 {strides = array<i32>} : memref<384x1xf32, #tpu.memory_space<vmem>>, vector<384x1xf32>,
    %c0_i32_6 = arith.constant 0 : i32
    %11 = arith.cmpi eq, %arg1, %c0_i32_6 : i32
    %12 = arith.extui %11 : i1 to i32
    %c0_i32_7 = arith.constant 0 : i32
    %13 = arith.cmpi ne, %12, %c0_i32_7 : i32
    scf.if %13 {
      %c0_8 = arith.constant 0 : index
      %c0_9 = arith.constant 0 : index
      %14 = vector.load %arg3[%c0_8, %c0_9] : memref<384x1xf32, #tpu.memory_space<vmem>>, vector<384x1xf32>
      %c0_10 = arith.constant 0 : index
      %c0_11 = arith.constant 0 : index
      %15 = vector.load %arg5[%c0_10, %c0_11] : memref<384x1xf32, #tpu.memory_space<vmem>>, vector<384x1xf32>
      %16 = math.rsqrt %15 : vector<384x1xf32>
      %17 = arith.mulf %14, %16 : vector<384x1xf32>
      %c0_12 = arith.constant 0 : index
      %c0_13 = arith.constant 0 : index
      %18 = vector.load %arg4[%c0_12, %c0_13] : memref<384x1xf32, #tpu.memory_space<vmem>>, vector<384x1xf32>
      tpu.vector_store %arg4[%c0_12, %c0_13], %17 {strides = array<i32>} : memref<384x1xf32, #tpu.memory_space<vmem>>, vector<384x1xf32>,
    } else {
    }
    return
  }
  func.func @transform_0(%arg0: i32, %arg1: i32) -> (i32, i32) {
    %c0_i32 = arith.constant 0 : i32
    return %arg0, %arg1 : i32, i32
  }
  func.func @transform_1(%arg0: i32, %arg1: i32) -> (i32, i32) {
    %c0_i32 = arith.constant 0 : i32
    %c0_i32_0 = arith.constant 0 : i32
    return %arg0, %c0_i32 : i32, i32
  }
  func.func @transform_2(%arg0: i32, %arg1: i32) -> (i32, i32) {
    %c0_i32 = arith.constant 0 : i32
    %c0_i32_0 = arith.constant 0 : i32
    return %arg0, %c0_i32 : i32, i32
  }
}

</mosaic_0001>

<llo_original>
// kernel: tpu_custom_call.1
$region0: #{tpu_custom_call.1}
  #allocation0 [shape = 'u32[]', space=smem, size = 0x4, offset = 0x4, fixed_abs, tag = 'smem constant byte address 0x4 - core index']
  #allocation1 [shape = 'u32[144,128]{1,0:T(1,128)}', space=vmem, size = 0x12000, scoped, tag = 'internal scratch']
  #allocation2 [shape = 'f32[384,1]{1,0:T(8,128)}', space=vmem, size = 0x30000, scoped, tag = 'scratch operand']
  %s0 = inlined_call_operand.vmem [shape: bf16[384,256], index: 0, kind: input, shape index: {}]
  %s1 = inlined_call_operand.vmem [shape: f32[384,1], index: 1, kind: input, shape index: {}]
  %s2 = inlined_call_operand.vmem [shape: f32[384,1], index: 2, kind: output, shape index: {}]
  %s3 = sld [smem:[#allocation0]]
  $region26: #{tpu_custom_call.1} parent=0
    _
  %s5 = ssub.s32 1, %s3
  %s6 = scalar_select 0, %s5, %s3
  // Predicated region
  $region2: #{tpu_custom_call.1} parent=0 // pred_check
    _
  $region3: #{tpu_custom_call.1} parent=0 // pred_check_branch
    %8 = sbr.rel (0) target = $region5
  $region4: #{tpu_custom_call.1} parent=0 // pred_region
    _
  $region5: #{tpu_custom_call.1} parent=0 // pred_fallthru
    _
  // Predicated region
  $region6: #{tpu_custom_call.1} parent=0 // pred_check
    _
  $region7: #{tpu_custom_call.1} parent=0 // pred_check_branch
    %10 = sbr.rel (0) target = $region9
  $region8: #{tpu_custom_call.1} parent=0 // pred_region
    _
  $region9: #{tpu_custom_call.1} parent=0 // pred_fallthru
    _
  %p11 = scmp.eq.s32.totalorder 0, 0
  // Predicated region
  $region10: #{tpu_custom_call.1} parent=0 // pred_check
    %p12 = pneg %p11
  $region11: #{tpu_custom_call.1} parent=0 // pred_check_branch
    %14 = sbr.rel (%p12) target = $region13
  $region12: #{tpu_custom_call.1} parent=0 // pred_region
    %vm15 = vcmask 7168
    %16 = vst.msk [vmem:[#allocation2] sm:$0xff] %vm15, 0.0
    %17 = vst.msk [vmem:[#allocation2 + $0x8] sm:$0xff] %vm15, 0.0
    %18 = vst.msk [vmem:[#allocation2 + $0x10] sm:$0xff] %vm15, 0.0
    %19 = vst.msk [vmem:[#allocation2 + $0x18] sm:$0xff] %vm15, 0.0
    %20 = vst.msk [vmem:[#allocation2 + $0x20] sm:$0xff] %vm15, 0.0
    %21 = vst.msk [vmem:[#allocation2 + $0x28] sm:$0xff] %vm15, 0.0
    %22 = vst.msk [vmem:[#allocation2 + $0x30] sm:$0xff] %vm15, 0.0
    %23 = vst.msk [vmem:[#allocation2 + $0x38] sm:$0xff] %vm15, 0.0
    %24 = vst.msk [vmem:[#allocation2 + $0x40] sm:$0xff] %vm15, 0.0
    %25 = vst.msk [vmem:[#allocation2 + $0x48] sm:$0xff] %vm15, 0.0
    %26 = vst.msk [vmem:[#allocation2 + $0x50] sm:$0xff] %vm15, 0.0
    %27 = vst.msk [vmem:[#allocation2 + $0x58] sm:$0xff] %vm15, 0.0
    %28 = vst.msk [vmem:[#allocation2 + $0x60] sm:$0xff] %vm15, 0.0
    %29 = vst.msk [vmem:[#allocation2 + $0x68] sm:$0xff] %vm15, 0.0
    %30 = vst.msk [vmem:[#allocation2 + $0x70] sm:$0xff] %vm15, 0.0
    %31 = vst.msk [vmem:[#allocation2 + $0x78] sm:$0xff] %vm15, 0.0
    %32 = vst.msk [vmem:[#allocation2 + $0x80] sm:$0xff] %vm15, 0.0
    %33 = vst.msk [vmem:[#allocation2 + $0x88] sm:$0xff] %vm15, 0.0
    %34 = vst.msk [vmem:[#allocation2 + $0x90] sm:$0xff] %vm15, 0.0
    %35 = vst.msk [vmem:[#allocation2 + $0x98] sm:$0xff] %vm15, 0.0
    %36 = vst.msk [vmem:[#allocation2 + $0xa0] sm:$0xff] %vm15, 0.0
    %37 = vst.msk [vmem:[#allocation2 + $0xa8] sm:$0xff] %vm15, 0.0
    %38 = vst.msk [vmem:[#allocation2 + $0xb0] sm:$0xff] %vm15, 0.0
    %39 = vst.msk [vmem:[#allocation2 + $0xb8] sm:$0xff] %vm15, 0.0
    %40 = vst.msk [vmem:[#allocation2 + $0xc0] sm:$0xff] %vm15, 0.0
    %41 = vst.msk [vmem:[#allocation2 + $0xc8] sm:$0xff] %vm15, 0.0
    %42 = vst.msk [vmem:[#allocation2 + $0xd0] sm:$0xff] %vm15, 0.0
    %43 = vst.msk [vmem:[#allocation2 + $0xd8] sm:$0xff] %vm15, 0.0
    %44 = vst.msk [vmem:[#allocation2 + $0xe0] sm:$0xff] %vm15, 0.0
    %45 = vst.msk [vmem:[#allocation2 + $0xe8] sm:$0xff] %vm15, 0.0
    %46 = vst.msk [vmem:[#allocation2 + $0xf0] sm:$0xff] %vm15, 0.0
    %47 = vst.msk [vmem:[#allocation2 + $0xf8] sm:$0xff] %vm15, 0.0
    %48 = vst.msk [vmem:[#allocation2 + $0x100] sm:$0xff] %vm15, 0.0
    %49 = vst.msk [vmem:[#allocation2 + $0x108] sm:$0xff] %vm15, 0.0
    %50 = vst.msk [vmem:[#allocation2 + $0x110] sm:$0xff] %vm15, 0.0
    %51 = vst.msk [vmem:[#allocation2 + $0x118] sm:$0xff] %vm15, 0.0
    %52 = vst.msk [vmem:[#allocation2 + $0x120] sm:$0xff] %vm15, 0.0
    %53 = vst.msk [vmem:[#allocation2 + $0x128] sm:$0xff] %vm15, 0.0
    %54 = vst.msk [vmem:[#allocation2 + $0x130] sm:$0xff] %vm15, 0.0
    %55 = vst.msk [vmem:[#allocation2 + $0x138] sm:$0xff] %vm15, 0.0
    %56 = vst.msk [vmem:[#allocation2 + $0x140] sm:$0xff] %vm15, 0.0
    %57 = vst.msk [vmem:[#allocation2 + $0x148] sm:$0xff] %vm15, 0.0
    %58 = vst.msk [vmem:[#allocation2 + $0x150] sm:$0xff] %vm15, 0.0
    %59 = vst.msk [vmem:[#allocation2 + $0x158] sm:$0xff] %vm15, 0.0
    %60 = vst.msk [vmem:[#allocation2 + $0x160] sm:$0xff] %vm15, 0.0
    %61 = vst.msk [vmem:[#allocation2 + $0x168] sm:$0xff] %vm15, 0.0
    %62 = vst.msk [vmem:[#allocation2 + $0x170] sm:$0xff] %vm15, 0.0
    %63 = vst.msk [vmem:[#allocation2 + $0x178] sm:$0xff] %vm15, 0.0
  $region13: #{tpu_custom_call.1} parent=0 // pred_fallthru
    _
  %v64 = vld [vmem:[%s0] sm:$0xff]
  %v65 = vld [vmem:[%s0 + $0x8] sm:$0xff]
  %v66 = vld [vmem:[%s0 + $0x10] sm:$0xff]
  %v67 = vld [vmem:[%s0 + $0x18] sm:$0xff]
  %v68 = vld [vmem:[%s0 + $0x20] sm:$0xff]
  %v69 = vld [vmem:[%s0 + $0x28] sm:$0xff]
  %v70 = vld [vmem:[%s0 + $0x30] sm:$0xff]
  %v71 = vld [vmem:[%s0 + $0x38] sm:$0xff]
  %v72 = vld [vmem:[%s0 + $0x40] sm:$0xff]
  %v73 = vld [vmem:[%s0 + $0x48] sm:$0xff]
  %v74 = vld [vmem:[%s0 + $0x50] sm:$0xff]
  %v75 = vld [vmem:[%s0 + $0x58] sm:$0xff]
  %v76 = vld [vmem:[%s0 + $0x60] sm:$0xff]
  %v77 = vld [vmem:[%s0 + $0x68] sm:$0xff]
  %v78 = vld [vmem:[%s0 + $0x70] sm:$0xff]
  %v79 = vld [vmem:[%s0 + $0x78] sm:$0xff]
  %v80 = vld [vmem:[%s0 + $0x80] sm:$0xff]
  %v81 = vld [vmem:[%s0 + $0x88] sm:$0xff]
  %v82 = vld [vmem:[%s0 + $0x90] sm:$0xff]
  %v83 = vld [vmem:[%s0 + $0x98] sm:$0xff]
  %v84 = vld [vmem:[%s0 + $0xa0] sm:$0xff]
  %v85 = vld [vmem:[%s0 + $0xa8] sm:$0xff]
  %v86 = vld [vmem:[%s0 + $0xb0] sm:$0xff]
  %v87 = vld [vmem:[%s0 + $0xb8] sm:$0xff]
  %v88 = vld [vmem:[%s0 + $0xc0] sm:$0xff]
  %v89 = vld [vmem:[%s0 + $0xc8] sm:$0xff]
  %v90 = vld [vmem:[%s0 + $0xd0] sm:$0xff]
  %v91 = vld [vmem:[%s0 + $0xd8] sm:$0xff]
  %v92 = vld [vmem:[%s0 + $0xe0] sm:$0xff]
  %v93 = vld [vmem:[%s0 + $0xe8] sm:$0xff]
  %v94 = vld [vmem:[%s0 + $0xf0] sm:$0xff]
  %v95 = vld [vmem:[%s0 + $0xf8] sm:$0xff]
  %v96 = vld [vmem:[%s0 + $0x100] sm:$0xff]
  %v97 = vld [vmem:[%s0 + $0x108] sm:$0xff]
  %v98 = vld [vmem:[%s0 + $0x110] sm:$0xff]
  %v99 = vld [vmem:[%s0 + $0x118] sm:$0xff]
  %v100 = vld [vmem:[%s0 + $0x120] sm:$0xff]
  %v101 = vld [vmem:[%s0 + $0x128] sm:$0xff]
  %v102 = vld [vmem:[%s0 + $0x130] sm:$0xff]
  %v103 = vld [vmem:[%s0 + $0x138] sm:$0xff]
  %v104 = vld [vmem:[%s0 + $0x140] sm:$0xff]
  %v105 = vld [vmem:[%s0 + $0x148] sm:$0xff]
  %v106 = vld [vmem:[%s0 + $0x150] sm:$0xff]
  %v107 = vld [vmem:[%s0 + $0x158] sm:$0xff]
  %v108 = vld [vmem:[%s0 + $0x160] sm:$0xff]
  %v109 = vld [vmem:[%s0 + $0x168] sm:$0xff]
  %v110 = vld [vmem:[%s0 + $0x170] sm:$0xff]
  %v111 = vld [vmem:[%s0 + $0x178] sm:$0xff]
  %v112 = vunpack.c.l.bf16 %v64
  %v113 = vunpack.c.h.bf16 %v64
  %v114 = vunpack.c.l.bf16 %v65
  %v115 = vunpack.c.h.bf16 %v65
  %v116 = vunpack.c.l.bf16 %v66
  %v117 = vunpack.c.h.bf16 %v66
  %v118 = vunpack.c.l.bf16 %v67
  %v119 = vunpack.c.h.bf16 %v67
  %v120 = vunpack.c.l.bf16 %v68
  %v121 = vunpack.c.h.bf16 %v68
  %v122 = vunpack.c.l.bf16 %v69
  %v123 = vunpack.c.h.bf16 %v69
  %v124 = vunpack.c.l.bf16 %v70
  %v125 = vunpack.c.h.bf16 %v70
  %v126 = vunpack.c.l.bf16 %v71
  %v127 = vunpack.c.h.bf16 %v71
  %v128 = vunpack.c.l.bf16 %v72
  %v129 = vunpack.c.h.bf16 %v72
  %v130 = vunpack.c.l.bf16 %v73
  %v131 = vunpack.c.h.bf16 %v73
  %v132 = vunpack.c.l.bf16 %v74
  %v133 = vunpack.c.h.bf16 %v74
  %v134 = vunpack.c.l.bf16 %v75
  %v135 = vunpack.c.h.bf16 %v75
  %v136 = vunpack.c.l.bf16 %v76
  %v137 = vunpack.c.h.bf16 %v76
  %v138 = vunpack.c.l.bf16 %v77
  %v139 = vunpack.c.h.bf16 %v77
  %v140 = vunpack.c.l.bf16 %v78
  %v141 = vunpack.c.h.bf16 %v78
  %v142 = vunpack.c.l.bf16 %v79
  %v143 = vunpack.c.h.bf16 %v79
  %v144 = vunpack.c.l.bf16 %v80
  %v145 = vunpack.c.h.bf16 %v80
  %v146 = vunpack.c.l.bf16 %v81
  %v147 = vunpack.c.h.bf16 %v81
  %v148 = vunpack.c.l.bf16 %v82
  %v149 = vunpack.c.h.bf16 %v82
  %v150 = vunpack.c.l.bf16 %v83
  %v151 = vunpack.c.h.bf16 %v83
  %v152 = vunpack.c.l.bf16 %v84
  %v153 = vunpack.c.h.bf16 %v84
  %v154 = vunpack.c.l.bf16 %v85
  %v155 = vunpack.c.h.bf16 %v85
  %v156 = vunpack.c.l.bf16 %v86
  %v157 = vunpack.c.h.bf16 %v86
  %v158 = vunpack.c.l.bf16 %v87
  %v159 = vunpack.c.h.bf16 %v87
  %v160 = vunpack.c.l.bf16 %v88
  %v161 = vunpack.c.h.bf16 %v88
  %v162 = vunpack.c.l.bf16 %v89
  %v163 = vunpack.c.h.bf16 %v89
  %v164 = vunpack.c.l.bf16 %v90
  %v165 = vunpack.c.h.bf16 %v90
  %v166 = vunpack.c.l.bf16 %v91
  %v167 = vunpack.c.h.bf16 %v91
  %v168 = vunpack.c.l.bf16 %v92
  %v169 = vunpack.c.h.bf16 %v92
  %v170 = vunpack.c.l.bf16 %v93
  %v171 = vunpack.c.h.bf16 %v93
  %v172 = vunpack.c.l.bf16 %v94
  %v173 = vunpack.c.h.bf16 %v94
  %v174 = vunpack.c.l.bf16 %v95
  %v175 = vunpack.c.h.bf16 %v95
  %v176 = vunpack.c.l.bf16 %v96
  %v177 = vunpack.c.h.bf16 %v96
  %v178 = vunpack.c.l.bf16 %v97
  %v179 = vunpack.c.h.bf16 %v97
  %v180 = vunpack.c.l.bf16 %v98
  %v181 = vunpack.c.h.bf16 %v98
  %v182 = vunpack.c.l.bf16 %v99
  %v183 = vunpack.c.h.bf16 %v99
  %v184 = vunpack.c.l.bf16 %v100
  %v185 = vunpack.c.h.bf16 %v100
  %v186 = vunpack.c.l.bf16 %v101
  %v187 = vunpack.c.h.bf16 %v101
  %v188 = vunpack.c.l.bf16 %v102
  %v189 = vunpack.c.h.bf16 %v102
  %v190 = vunpack.c.l.bf16 %v103
  %v191 = vunpack.c.h.bf16 %v103
  %v192 = vunpack.c.l.bf16 %v104
  %v193 = vunpack.c.h.bf16 %v104
  %v194 = vunpack.c.l.bf16 %v105
  %v195 = vunpack.c.h.bf16 %v105
  %v196 = vunpack.c.l.bf16 %v106
  %v197 = vunpack.c.h.bf16 %v106
  %v198 = vunpack.c.l.bf16 %v107
  %v199 = vunpack.c.h.bf16 %v107
  %v200 = vunpack.c.l.bf16 %v108
  %v201 = vunpack.c.h.bf16 %v108
  %v202 = vunpack.c.l.bf16 %v109
  %v203 = vunpack.c.h.bf16 %v109
  %v204 = vunpack.c.l.bf16 %v110
  %v205 = vunpack.c.h.bf16 %v110
  %v206 = vunpack.c.l.bf16 %v111
  %v207 = vunpack.c.h.bf16 %v111
  %v208 = vld [vmem:[#allocation2] sm:$0xff]
  %v209 = vld [vmem:[#allocation2 + $0x8] sm:$0xff]
  %v210 = vld [vmem:[#allocation2 + $0x10] sm:$0xff]
  %v211 = vld [vmem:[#allocation2 + $0x18] sm:$0xff]
  %v212 = vld [vmem:[#allocation2 + $0x20] sm:$0xff]
  %v213 = vld [vmem:[#allocation2 + $0x28] sm:$0xff]
  %v214 = vld [vmem:[#allocation2 + $0x30] sm:$0xff]
  %v215 = vld [vmem:[#allocation2 + $0x38] sm:$0xff]
  %v216 = vld [vmem:[#allocation2 + $0x40] sm:$0xff]
  %v217 = vld [vmem:[#allocation2 + $0x48] sm:$0xff]
  %v218 = vld [vmem:[#allocation2 + $0x50] sm:$0xff]
  %v219 = vld [vmem:[#allocation2 + $0x58] sm:$0xff]
  %v220 = vld [vmem:[#allocation2 + $0x60] sm:$0xff]
  %v221 = vld [vmem:[#allocation2 + $0x68] sm:$0xff]
  %v222 = vld [vmem:[#allocation2 + $0x70] sm:$0xff]
  %v223 = vld [vmem:[#allocation2 + $0x78] sm:$0xff]
  %v224 = vld [vmem:[#allocation2 + $0x80] sm:$0xff]
  %v225 = vld [vmem:[#allocation2 + $0x88] sm:$0xff]
  %v226 = vld [vmem:[#allocation2 + $0x90] sm:$0xff]
  %v227 = vld [vmem:[#allocation2 + $0x98] sm:$0xff]
  %v228 = vld [vmem:[#allocation2 + $0xa0] sm:$0xff]
  %v229 = vld [vmem:[#allocation2 + $0xa8] sm:$0xff]
  %v230 = vld [vmem:[#allocation2 + $0xb0] sm:$0xff]
  %v231 = vld [vmem:[#allocation2 + $0xb8] sm:$0xff]
  %v232 = vld [vmem:[#allocation2 + $0xc0] sm:$0xff]
  %v233 = vld [vmem:[#allocation2 + $0xc8] sm:$0xff]
  %v234 = vld [vmem:[#allocation2 + $0xd0] sm:$0xff]
  %v235 = vld [vmem:[#allocation2 + $0xd8] sm:$0xff]
  %v236 = vld [vmem:[#allocation2 + $0xe0] sm:$0xff]
  %v237 = vld [vmem:[#allocation2 + $0xe8] sm:$0xff]
  %v238 = vld [vmem:[#allocation2 + $0xf0] sm:$0xff]
  %v239 = vld [vmem:[#allocation2 + $0xf8] sm:$0xff]
  %v240 = vld [vmem:[#allocation2 + $0x100] sm:$0xff]
  %v241 = vld [vmem:[#allocation2 + $0x108] sm:$0xff]
  %v242 = vld [vmem:[#allocation2 + $0x110] sm:$0xff]
  %v243 = vld [vmem:[#allocation2 + $0x118] sm:$0xff]
  %v244 = vld [vmem:[#allocation2 + $0x120] sm:$0xff]
  %v245 = vld [vmem:[#allocation2 + $0x128] sm:$0xff]
  %v246 = vld [vmem:[#allocation2 + $0x130] sm:$0xff]
  %v247 = vld [vmem:[#allocation2 + $0x138] sm:$0xff]
  %v248 = vld [vmem:[#allocation2 + $0x140] sm:$0xff]
  %v249 = vld [vmem:[#allocation2 + $0x148] sm:$0xff]
  %v250 = vld [vmem:[#allocation2 + $0x150] sm:$0xff]
  %v251 = vld [vmem:[#allocation2 + $0x158] sm:$0xff]
  %v252 = vld [vmem:[#allocation2 + $0x160] sm:$0xff]
  %v253 = vld [vmem:[#allocation2 + $0x168] sm:$0xff]
  %v254 = vld [vmem:[#allocation2 + $0x170] sm:$0xff]
  %v255 = vld [vmem:[#allocation2 + $0x178] sm:$0xff]
  %v256 = vmul.f32 %v112, %v112
  %v257 = vmul.f32 %v113, %v113
  %v258 = vmul.f32 %v114, %v114
  %v259 = vmul.f32 %v115, %v115
  %v260 = vmul.f32 %v116, %v116
  %v261 = vmul.f32 %v117, %v117
  %v262 = vmul.f32 %v118, %v118
  %v263 = vmul.f32 %v119, %v119
  %v264 = vmul.f32 %v120, %v120
  %v265 = vmul.f32 %v121, %v121
  %v266 = vmul.f32 %v122, %v122
  %v267 = vmul.f32 %v123, %v123
  %v268 = vmul.f32 %v124, %v124
  %v269 = vmul.f32 %v125, %v125
  %v270 = vmul.f32 %v126, %v126
  %v271 = vmul.f32 %v127, %v127
  %v272 = vmul.f32 %v128, %v128
  %v273 = vmul.f32 %v129, %v129
  %v274 = vmul.f32 %v130, %v130
  %v275 = vmul.f32 %v131, %v131
  %v276 = vmul.f32 %v132, %v132
  %v277 = vmul.f32 %v133, %v133
  %v278 = vmul.f32 %v134, %v134
  %v279 = vmul.f32 %v135, %v135
  %v280 = vmul.f32 %v136, %v136
  %v281 = vmul.f32 %v137, %v137
  %v282 = vmul.f32 %v138, %v138
  %v283 = vmul.f32 %v139, %v139
  %v284 = vmul.f32 %v140, %v140
  %v285 = vmul.f32 %v141, %v141
  %v286 = vmul.f32 %v142, %v142
  %v287 = vmul.f32 %v143, %v143
  %v288 = vmul.f32 %v144, %v144
  %v289 = vmul.f32 %v145, %v145
  %v290 = vmul.f32 %v146, %v146
  %v291 = vmul.f32 %v147, %v147
  %v292 = vmul.f32 %v148, %v148
  %v293 = vmul.f32 %v149, %v149
  %v294 = vmul.f32 %v150, %v150
  %v295 = vmul.f32 %v151, %v151
  %v296 = vmul.f32 %v152, %v152
  %v297 = vmul.f32 %v153, %v153
  %v298 = vmul.f32 %v154, %v154
  %v299 = vmul.f32 %v155, %v155
  %v300 = vmul.f32 %v156, %v156
  %v301 = vmul.f32 %v157, %v157
  %v302 = vmul.f32 %v158, %v158
  %v303 = vmul.f32 %v159, %v159
  %v304 = vmul.f32 %v160, %v160
  %v305 = vmul.f32 %v161, %v161
  %v306 = vmul.f32 %v162, %v162
  %v307 = vmul.f32 %v163, %v163
  %v308 = vmul.f32 %v164, %v164
  %v309 = vmul.f32 %v165, %v165
  %v310 = vmul.f32 %v166, %v166
  %v311 = vmul.f32 %v167, %v167
  %v312 = vmul.f32 %v168, %v168
  %v313 = vmul.f32 %v169, %v169
  %v314 = vmul.f32 %v170, %v170
  %v315 = vmul.f32 %v171, %v171
  %v316 = vmul.f32 %v172, %v172
  %v317 = vmul.f32 %v173, %v173
  %v318 = vmul.f32 %v174, %v174
  %v319 = vmul.f32 %v175, %v175
  %v320 = vmul.f32 %v176, %v176
  %v321 = vmul.f32 %v177, %v177
  %v322 = vmul.f32 %v178, %v178
  %v323 = vmul.f32 %v179, %v179
  %v324 = vmul.f32 %v180, %v180
  %v325 = vmul.f32 %v181, %v181
  %v326 = vmul.f32 %v182, %v182
  %v327 = vmul.f32 %v183, %v183
  %v328 = vmul.f32 %v184, %v184
  %v329 = vmul.f32 %v185, %v185
  %v330 = vmul.f32 %v186, %v186
  %v331 = vmul.f32 %v187, %v187
  %v332 = vmul.f32 %v188, %v188
  %v333 = vmul.f32 %v189, %v189
  %v334 = vmul.f32 %v190, %v190
  %v335 = vmul.f32 %v191, %v191
  %v336 = vmul.f32 %v192, %v192
  %v337 = vmul.f32 %v193, %v193
  %v338 = vmul.f32 %v194, %v194
  %v339 = vmul.f32 %v195, %v195
  %v340 = vmul.f32 %v196, %v196
  %v341 = vmul.f32 %v197, %v197
  %v342 = vmul.f32 %v198, %v198
  %v343 = vmul.f32 %v199, %v199
  %v344 = vmul.f32 %v200, %v200
  %v345 = vmul.f32 %v201, %v201
  %v346 = vmul.f32 %v202, %v202
  %v347 = vmul.f32 %v203, %v203
  %v348 = vmul.f32 %v204, %v204
  %v349 = vmul.f32 %v205, %v205
  %v350 = vmul.f32 %v206, %v206
  %v351 = vmul.f32 %v207, %v207
  %v352 = vadd.f32 %v256, %v257
  %353 = vadd.xlane.f32.xlu0 %v352
  %v354 = vpop.xlane.xlu0 %353
  %v355 = vadd.f32 %v258, %v259
  %356 = vadd.xlane.f32.xlu0 %v355
  %v357 = vpop.xlane.xlu0 %356
  %v358 = vadd.f32 %v260, %v261
  %359 = vadd.xlane.f32.xlu0 %v358
  %v360 = vpop.xlane.xlu0 %359
  %v361 = vadd.f32 %v262, %v263
  %362 = vadd.xlane.f32.xlu0 %v361
  %v363 = vpop.xlane.xlu0 %362
  %v364 = vadd.f32 %v264, %v265
  %365 = vadd.xlane.f32.xlu0 %v364
  %v366 = vpop.xlane.xlu0 %365
  %v367 = vadd.f32 %v266, %v267
  %368 = vadd.xlane.f32.xlu0 %v367
  %v369 = vpop.xlane.xlu0 %368
  %v370 = vadd.f32 %v268, %v269
  %371 = vadd.xlane.f32.xlu0 %v370
  %v372 = vpop.xlane.xlu0 %371
  %v373 = vadd.f32 %v270, %v271
  %374 = vadd.xlane.f32.xlu0 %v373
  %v375 = vpop.xlane.xlu0 %374
  %v376 = vadd.f32 %v272, %v273
  %377 = vadd.xlane.f32.xlu0 %v376
  %v378 = vpop.xlane.xlu0 %377
  %v379 = vadd.f32 %v274, %v275
  %380 = vadd.xlane.f32.xlu0 %v379
  %v381 = vpop.xlane.xlu0 %380
  %v382 = vadd.f32 %v276, %v277
  %383 = vadd.xlane.f32.xlu0 %v382
  %v384 = vpop.xlane.xlu0 %383
  %v385 = vadd.f32 %v278, %v279
  %386 = vadd.xlane.f32.xlu0 %v385
  %v387 = vpop.xlane.xlu0 %386
  %v388 = vadd.f32 %v280, %v281
  %389 = vadd.xlane.f32.xlu0 %v388
  %v390 = vpop.xlane.xlu0 %389
  %v391 = vadd.f32 %v282, %v283
  %392 = vadd.xlane.f32.xlu0 %v391
  %v393 = vpop.xlane.xlu0 %392
  %v394 = vadd.f32 %v284, %v285
  %395 = vadd.xlane.f32.xlu0 %v394
  %v396 = vpop.xlane.xlu0 %395
  %v397 = vadd.f32 %v286, %v287
  %398 = vadd.xlane.f32.xlu0 %v397
  %v399 = vpop.xlane.xlu0 %398
  %v400 = vadd.f32 %v288, %v289
  %401 = vadd.xlane.f32.xlu0 %v400
  %v402 = vpop.xlane.xlu0 %401
  %v403 = vadd.f32 %v290, %v291
  %404 = vadd.xlane.f32.xlu0 %v403
  %v405 = vpop.xlane.xlu0 %404
  %v406 = vadd.f32 %v292, %v293
  %407 = vadd.xlane.f32.xlu0 %v406
  %v408 = vpop.xlane.xlu0 %407
  %v409 = vadd.f32 %v294, %v295
  %410 = vadd.xlane.f32.xlu0 %v409
  %v411 = vpop.xlane.xlu0 %410
  %v412 = vadd.f32 %v296, %v297
  %413 = vadd.xlane.f32.xlu0 %v412
  %v414 = vpop.xlane.xlu0 %413
  %v415 = vadd.f32 %v298, %v299
  %416 = vadd.xlane.f32.xlu0 %v415
  %v417 = vpop.xlane.xlu0 %416
  %v418 = vadd.f32 %v300, %v301
  %419 = vadd.xlane.f32.xlu0 %v418
  %v420 = vpop.xlane.xlu0 %419
  %v421 = vadd.f32 %v302, %v303
  %422 = vadd.xlane.f32.xlu0 %v421
  %v423 = vpop.xlane.xlu0 %422
  %v424 = vadd.f32 %v304, %v305
  %425 = vadd.xlane.f32.xlu0 %v424
  %v426 = vpop.xlane.xlu0 %425
  %v427 = vadd.f32 %v306, %v307
  %428 = vadd.xlane.f32.xlu0 %v427
  %v429 = vpop.xlane.xlu0 %428
  %v430 = vadd.f32 %v308, %v309
  %431 = vadd.xlane.f32.xlu0 %v430
  %v432 = vpop.xlane.xlu0 %431
  %v433 = vadd.f32 %v310, %v311
  %434 = vadd.xlane.f32.xlu0 %v433
  %v435 = vpop.xlane.xlu0 %434
  %v436 = vadd.f32 %v312, %v313
  %437 = vadd.xlane.f32.xlu0 %v436
  %v438 = vpop.xlane.xlu0 %437
  %v439 = vadd.f32 %v314, %v315
  %440 = vadd.xlane.f32.xlu0 %v439
  %v441 = vpop.xlane.xlu0 %440
  %v442 = vadd.f32 %v316, %v317
  %443 = vadd.xlane.f32.xlu0 %v442
  %v444 = vpop.xlane.xlu0 %443
  %v445 = vadd.f32 %v318, %v319
  %446 = vadd.xlane.f32.xlu0 %v445
  %v447 = vpop.xlane.xlu0 %446
  %v448 = vadd.f32 %v320, %v321
  %449 = vadd.xlane.f32.xlu0 %v448
  %v450 = vpop.xlane.xlu0 %449
  %v451 = vadd.f32 %v322, %v323
  %452 = vadd.xlane.f32.xlu0 %v451
  %v453 = vpop.xlane.xlu0 %452
  %v454 = vadd.f32 %v324, %v325
  %455 = vadd.xlane.f32.xlu0 %v454
  %v456 = vpop.xlane.xlu0 %455
  %v457 = vadd.f32 %v326, %v327
  %458 = vadd.xlane.f32.xlu0 %v457
  %v459 = vpop.xlane.xlu0 %458
  %v460 = vadd.f32 %v328, %v329
  %461 = vadd.xlane.f32.xlu0 %v460
  %v462 = vpop.xlane.xlu0 %461
  %v463 = vadd.f32 %v330, %v331
  %464 = vadd.xlane.f32.xlu0 %v463
  %v465 = vpop.xlane.xlu0 %464
  %v466 = vadd.f32 %v332, %v333
  %467 = vadd.xlane.f32.xlu0 %v466
  %v468 = vpop.xlane.xlu0 %467
  %v469 = vadd.f32 %v334, %v335
  %470 = vadd.xlane.f32.xlu0 %v469
  %v471 = vpop.xlane.xlu0 %470
  %v472 = vadd.f32 %v336, %v337
  %473 = vadd.xlane.f32.xlu0 %v472
  %v474 = vpop.xlane.xlu0 %473
  %v475 = vadd.f32 %v338, %v339
  %476 = vadd.xlane.f32.xlu0 %v475
  %v477 = vpop.xlane.xlu0 %476
  %v478 = vadd.f32 %v340, %v341
  %479 = vadd.xlane.f32.xlu0 %v478
  %v480 = vpop.xlane.xlu0 %479
  %v481 = vadd.f32 %v342, %v343
  %482 = vadd.xlane.f32.xlu0 %v481
  %v483 = vpop.xlane.xlu0 %482
  %v484 = vadd.f32 %v344, %v345
  %485 = vadd.xlane.f32.xlu0 %v484
  %v486 = vpop.xlane.xlu0 %485
  %v487 = vadd.f32 %v346, %v347
  %488 = vadd.xlane.f32.xlu0 %v487
  %v489 = vpop.xlane.xlu0 %488
  %v490 = vadd.f32 %v348, %v349
  %491 = vadd.xlane.f32.xlu0 %v490
  %v492 = vpop.xlane.xlu0 %491
  %v493 = vadd.f32 %v350, %v351
  %494 = vadd.xlane.f32.xlu0 %v493
  %v495 = vpop.xlane.xlu0 %494
  %v496 = vadd.f32 %v208, %v354
  %v497 = vadd.f32 %v209, %v357
  %v498 = vadd.f32 %v210, %v360
  %v499 = vadd.f32 %v211, %v363
  %v500 = vadd.f32 %v212, %v366
  %v501 = vadd.f32 %v213, %v369
  %v502 = vadd.f32 %v214, %v372
  %v503 = vadd.f32 %v215, %v375
  %v504 = vadd.f32 %v216, %v378
  %v505 = vadd.f32 %v217, %v381
  %v506 = vadd.f32 %v218, %v384
  %v507 = vadd.f32 %v219, %v387
  %v508 = vadd.f32 %v220, %v390
  %v509 = vadd.f32 %v221, %v393
  %v510 = vadd.f32 %v222, %v396
  %v511 = vadd.f32 %v223, %v399
  %v512 = vadd.f32 %v224, %v402
  %v513 = vadd.f32 %v225, %v405
  %v514 = vadd.f32 %v226, %v408
  %v515 = vadd.f32 %v227, %v411
  %v516 = vadd.f32 %v228, %v414
  %v517 = vadd.f32 %v229, %v417
  %v518 = vadd.f32 %v230, %v420
  %v519 = vadd.f32 %v231, %v423
  %v520 = vadd.f32 %v232, %v426
  %v521 = vadd.f32 %v233, %v429
  %v522 = vadd.f32 %v234, %v432
  %v523 = vadd.f32 %v235, %v435
  %v524 = vadd.f32 %v236, %v438
  %v525 = vadd.f32 %v237, %v441
  %v526 = vadd.f32 %v238, %v444
  %v527 = vadd.f32 %v239, %v447
  %v528 = vadd.f32 %v240, %v450
  %v529 = vadd.f32 %v241, %v453
  %v530 = vadd.f32 %v242, %v456
  %v531 = vadd.f32 %v243, %v459
  %v532 = vadd.f32 %v244, %v462
  %v533 = vadd.f32 %v245, %v465
  %v534 = vadd.f32 %v246, %v468
  %v535 = vadd.f32 %v247, %v471
  %v536 = vadd.f32 %v248, %v474
  %v537 = vadd.f32 %v249, %v477
  %v538 = vadd.f32 %v250, %v480
  %v539 = vadd.f32 %v251, %v483
  %v540 = vadd.f32 %v252, %v486
  %v541 = vadd.f32 %v253, %v489
  %v542 = vadd.f32 %v254, %v492
  %v543 = vadd.f32 %v255, %v495
  %vm544 = vcmask 7168
  %545 = vst.msk [vmem:[#allocation2] sm:$0xff] %vm544, %v496
  %546 = vst.msk [vmem:[#allocation2 + $0x8] sm:$0xff] %vm544, %v497
  %547 = vst.msk [vmem:[#allocation2 + $0x10] sm:$0xff] %vm544, %v498
  %548 = vst.msk [vmem:[#allocation2 + $0x18] sm:$0xff] %vm544, %v499
  %549 = vst.msk [vmem:[#allocation2 + $0x20] sm:$0xff] %vm544, %v500
  %550 = vst.msk [vmem:[#allocation2 + $0x28] sm:$0xff] %vm544, %v501
  %551 = vst.msk [vmem:[#allocation2 + $0x30] sm:$0xff] %vm544, %v502
  %552 = vst.msk [vmem:[#allocation2 + $0x38] sm:$0xff] %vm544, %v503
  %553 = vst.msk [vmem:[#allocation2 + $0x40] sm:$0xff] %vm544, %v504
  %554 = vst.msk [vmem:[#allocation2 + $0x48] sm:$0xff] %vm544, %v505
  %555 = vst.msk [vmem:[#allocation2 + $0x50] sm:$0xff] %vm544, %v506
  %556 = vst.msk [vmem:[#allocation2 + $0x58] sm:$0xff] %vm544, %v507
  %557 = vst.msk [vmem:[#allocation2 + $0x60] sm:$0xff] %vm544, %v508
  %558 = vst.msk [vmem:[#allocation2 + $0x68] sm:$0xff] %vm544, %v509
  %559 = vst.msk [vmem:[#allocation2 + $0x70] sm:$0xff] %vm544, %v510
  %560 = vst.msk [vmem:[#allocation2 + $0x78] sm:$0xff] %vm544, %v511
  %561 = vst.msk [vmem:[#allocation2 + $0x80] sm:$0xff] %vm544, %v512
  %562 = vst.msk [vmem:[#allocation2 + $0x88] sm:$0xff] %vm544, %v513
  %563 = vst.msk [vmem:[#allocation2 + $0x90] sm:$0xff] %vm544, %v514
  %564 = vst.msk [vmem:[#allocation2 + $0x98] sm:$0xff] %vm544, %v515
  %565 = vst.msk [vmem:[#allocation2 + $0xa0] sm:$0xff] %vm544, %v516
  %566 = vst.msk [vmem:[#allocation2 + $0xa8] sm:$0xff] %vm544, %v517
  %567 = vst.msk [vmem:[#allocation2 + $0xb0] sm:$0xff] %vm544, %v518
  %568 = vst.msk [vmem:[#allocation2 + $0xb8] sm:$0xff] %vm544, %v519
  %569 = vst.msk [vmem:[#allocation2 + $0xc0] sm:$0xff] %vm544, %v520
  %570 = vst.msk [vmem:[#allocation2 + $0xc8] sm:$0xff] %vm544, %v521
  %571 = vst.msk [vmem:[#allocation2 + $0xd0] sm:$0xff] %vm544, %v522
  %572 = vst.msk [vmem:[#allocation2 + $0xd8] sm:$0xff] %vm544, %v523
  %573 = vst.msk [vmem:[#allocation2 + $0xe0] sm:$0xff] %vm544, %v524
  %574 = vst.msk [vmem:[#allocation2 + $0xe8] sm:$0xff] %vm544, %v525
  %575 = vst.msk [vmem:[#allocation2 + $0xf0] sm:$0xff] %vm544, %v526
  %576 = vst.msk [vmem:[#allocation2 + $0xf8] sm:$0xff] %vm544, %v527
  %577 = vst.msk [vmem:[#allocation2 + $0x100] sm:$0xff] %vm544, %v528
  %578 = vst.msk [vmem:[#allocation2 + $0x108] sm:$0xff] %vm544, %v529
  %579 = vst.msk [vmem:[#allocation2 + $0x110] sm:$0xff] %vm544, %v530
  %580 = vst.msk [vmem:[#allocation2 + $0x118] sm:$0xff] %vm544, %v531
  %581 = vst.msk [vmem:[#allocation2 + $0x120] sm:$0xff] %vm544, %v532
  %582 = vst.msk [vmem:[#allocation2 + $0x128] sm:$0xff] %vm544, %v533
  %583 = vst.msk [vmem:[#allocation2 + $0x130] sm:$0xff] %vm544, %v534
  %584 = vst.msk [vmem:[#allocation2 + $0x138] sm:$0xff] %vm544, %v535
  %585 = vst.msk [vmem:[#allocation2 + $0x140] sm:$0xff] %vm544, %v536
  %586 = vst.msk [vmem:[#allocation2 + $0x148] sm:$0xff] %vm544, %v537
  %587 = vst.msk [vmem:[#allocation2 + $0x150] sm:$0xff] %vm544, %v538
  %588 = vst.msk [vmem:[#allocation2 + $0x158] sm:$0xff] %vm544, %v539
  %589 = vst.msk [vmem:[#allocation2 + $0x160] sm:$0xff] %vm544, %v540
  %590 = vst.msk [vmem:[#allocation2 + $0x168] sm:$0xff] %vm544, %v541
  %591 = vst.msk [vmem:[#allocation2 + $0x170] sm:$0xff] %vm544, %v542
  %592 = vst.msk [vmem:[#allocation2 + $0x178] sm:$0xff] %vm544, %v543
  // Predicated region
  $region14: #{tpu_custom_call.1} parent=0 // pred_check
    %p593 = pneg %p11
  $region15: #{tpu_custom_call.1} parent=0 // pred_check_branch
    %595 = sbr.rel (%p593) target = $region17
  $region16: #{tpu_custom_call.1} parent=0 // pred_region
    %v596 = vld [vmem:[%s1] sm:$0xff]
    %v597 = vld [vmem:[%s1 + $0x8] sm:$0xff]
    %v598 = vld [vmem:[%s1 + $0x10] sm:$0xff]
    %v599 = vld [vmem:[%s1 + $0x18] sm:$0xff]
    %v600 = vld [vmem:[%s1 + $0x20] sm:$0xff]
    %v601 = vld [vmem:[%s1 + $0x28] sm:$0xff]
    %v602 = vld [vmem:[%s1 + $0x30] sm:$0xff]
    %v603 = vld [vmem:[%s1 + $0x38] sm:$0xff]
    %v604 = vld [vmem:[%s1 + $0x40] sm:$0xff]
    %v605 = vld [vmem:[%s1 + $0x48] sm:$0xff]
    %v606 = vld [vmem:[%s1 + $0x50] sm:$0xff]
    %v607 = vld [vmem:[%s1 + $0x58] sm:$0xff]
    %v608 = vld [vmem:[%s1 + $0x60] sm:$0xff]
    %v609 = vld [vmem:[%s1 + $0x68] sm:$0xff]
    %v610 = vld [vmem:[%s1 + $0x70] sm:$0xff]
    %v611 = vld [vmem:[%s1 + $0x78] sm:$0xff]
    %v612 = vld [vmem:[%s1 + $0x80] sm:$0xff]
    %v613 = vld [vmem:[%s1 + $0x88] sm:$0xff]
    %v614 = vld [vmem:[%s1 + $0x90] sm:$0xff]
    %v615 = vld [vmem:[%s1 + $0x98] sm:$0xff]
    %v616 = vld [vmem:[%s1 + $0xa0] sm:$0xff]
    %v617 = vld [vmem:[%s1 + $0xa8] sm:$0xff]
    %v618 = vld [vmem:[%s1 + $0xb0] sm:$0xff]
    %v619 = vld [vmem:[%s1 + $0xb8] sm:$0xff]
    %v620 = vld [vmem:[%s1 + $0xc0] sm:$0xff]
    %v621 = vld [vmem:[%s1 + $0xc8] sm:$0xff]
    %v622 = vld [vmem:[%s1 + $0xd0] sm:$0xff]
    %v623 = vld [vmem:[%s1 + $0xd8] sm:$0xff]
    %v624 = vld [vmem:[%s1 + $0xe0] sm:$0xff]
    %v625 = vld [vmem:[%s1 + $0xe8] sm:$0xff]
    %v626 = vld [vmem:[%s1 + $0xf0] sm:$0xff]
    %v627 = vld [vmem:[%s1 + $0xf8] sm:$0xff]
    %v628 = vld [vmem:[%s1 + $0x100] sm:$0xff]
    %v629 = vld [vmem:[%s1 + $0x108] sm:$0xff]
    %v630 = vld [vmem:[%s1 + $0x110] sm:$0xff]
    %v631 = vld [vmem:[%s1 + $0x118] sm:$0xff]
    %v632 = vld [vmem:[%s1 + $0x120] sm:$0xff]
    %v633 = vld [vmem:[%s1 + $0x128] sm:$0xff]
    %v634 = vld [vmem:[%s1 + $0x130] sm:$0xff]
    %v635 = vld [vmem:[%s1 + $0x138] sm:$0xff]
    %v636 = vld [vmem:[%s1 + $0x140] sm:$0xff]
    %v637 = vld [vmem:[%s1 + $0x148] sm:$0xff]
    %v638 = vld [vmem:[%s1 + $0x150] sm:$0xff]
    %v639 = vld [vmem:[%s1 + $0x158] sm:$0xff]
    %v640 = vld [vmem:[%s1 + $0x160] sm:$0xff]
    %v641 = vld [vmem:[%s1 + $0x168] sm:$0xff]
    %v642 = vld [vmem:[%s1 + $0x170] sm:$0xff]
    %v643 = vld [vmem:[%s1 + $0x178] sm:$0xff]
    %v644 = vld [vmem:[#allocation2] sm:$0xff]
    %v645 = vld [vmem:[#allocation2 + $0x8] sm:$0xff]
    %v646 = vld [vmem:[#allocation2 + $0x10] sm:$0xff]
    %v647 = vld [vmem:[#allocation2 + $0x18] sm:$0xff]
    %v648 = vld [vmem:[#allocation2 + $0x20] sm:$0xff]
    %v649 = vld [vmem:[#allocation2 + $0x28] sm:$0xff]
    %v650 = vld [vmem:[#allocation2 + $0x30] sm:$0xff]
    %v651 = vld [vmem:[#allocation2 + $0x38] sm:$0xff]
    %v652 = vld [vmem:[#allocation2 + $0x40] sm:$0xff]
    %v653 = vld [vmem:[#allocation2 + $0x48] sm:$0xff]
    %v654 = vld [vmem:[#allocation2 + $0x50] sm:$0xff]
    %v655 = vld [vmem:[#allocation2 + $0x58] sm:$0xff]
    %v656 = vld [vmem:[#allocation2 + $0x60] sm:$0xff]
    %v657 = vld [vmem:[#allocation2 + $0x68] sm:$0xff]
    %v658 = vld [vmem:[#allocation2 + $0x70] sm:$0xff]
    %v659 = vld [vmem:[#allocation2 + $0x78] sm:$0xff]
    %v660 = vld [vmem:[#allocation2 + $0x80] sm:$0xff]
    %v661 = vld [vmem:[#allocation2 + $0x88] sm:$0xff]
    %v662 = vld [vmem:[#allocation2 + $0x90] sm:$0xff]
    %v663 = vld [vmem:[#allocation2 + $0x98] sm:$0xff]
    %v664 = vld [vmem:[#allocation2 + $0xa0] sm:$0xff]
    %v665 = vld [vmem:[#allocation2 + $0xa8] sm:$0xff]
    %v666 = vld [vmem:[#allocation2 + $0xb0] sm:$0xff]
    %v667 = vld [vmem:[#allocation2 + $0xb8] sm:$0xff]
    %v668 = vld [vmem:[#allocation2 + $0xc0] sm:$0xff]
    %v669 = vld [vmem:[#allocation2 + $0xc8] sm:$0xff]
    %v670 = vld [vmem:[#allocation2 + $0xd0] sm:$0xff]
    %v671 = vld [vmem:[#allocation2 + $0xd8] sm:$0xff]
    %v672 = vld [vmem:[#allocation2 + $0xe0] sm:$0xff]
    %v673 = vld [vmem:[#allocation2 + $0xe8] sm:$0xff]
    %v674 = vld [vmem:[#allocation2 + $0xf0] sm:$0xff]
    %v675 = vld [vmem:[#allocation2 + $0xf8] sm:$0xff]
    %v676 = vld [vmem:[#allocation2 + $0x100] sm:$0xff]
    %v677 = vld [vmem:[#allocation2 + $0x108] sm:$0xff]
    %v678 = vld [vmem:[#allocation2 + $0x110] sm:$0xff]
    %v679 = vld [vmem:[#allocation2 + $0x118] sm:$0xff]
    %v680 = vld [vmem:[#allocation2 + $0x120] sm:$0xff]
    %v681 = vld [vmem:[#allocation2 + $0x128] sm:$0xff]
    %v682 = vld [vmem:[#allocation2 + $0x130] sm:$0xff]
    %v683 = vld [vmem:[#allocation2 + $0x138] sm:$0xff]
    %v684 = vld [vmem:[#allocation2 + $0x140] sm:$0xff]
    %v685 = vld [vmem:[#allocation2 + $0x148] sm:$0xff]
    %v686 = vld [vmem:[#allocation2 + $0x150] sm:$0xff]
    %v687 = vld [vmem:[#allocation2 + $0x158] sm:$0xff]
    %v688 = vld [vmem:[#allocation2 + $0x160] sm:$0xff]
    %v689 = vld [vmem:[#allocation2 + $0x168] sm:$0xff]
    %v690 = vld [vmem:[#allocation2 + $0x170] sm:$0xff]
    %v691 = vld [vmem:[#allocation2 + $0x178] sm:$0xff]
    %v692 = vrsqrt.pop %v644
    %v693 = vrsqrt.pop %v645
    %v694 = vrsqrt.pop %v646
    %v695 = vrsqrt.pop %v647
    %v696 = vrsqrt.pop %v648
    %v697 = vrsqrt.pop %v649
    %v698 = vrsqrt.pop %v650
    %v699 = vrsqrt.pop %v651
    %v700 = vrsqrt.pop %v652
    %v701 = vrsqrt.pop %v653
    %v702 = vrsqrt.pop %v654
    %v703 = vrsqrt.pop %v655
    %v704 = vrsqrt.pop %v656
    %v705 = vrsqrt.pop %v657
    %v706 = vrsqrt.pop %v658
    %v707 = vrsqrt.pop %v659
    %v708 = vrsqrt.pop %v660
    %v709 = vrsqrt.pop %v661
    %v710 = vrsqrt.pop %v662
    %v711 = vrsqrt.pop %v663
    %v712 = vrsqrt.pop %v664
    %v713 = vrsqrt.pop %v665
    %v714 = vrsqrt.pop %v666
    %v715 = vrsqrt.pop %v667
    %v716 = vrsqrt.pop %v668
    %v717 = vrsqrt.pop %v669
    %v718 = vrsqrt.pop %v670
    %v719 = vrsqrt.pop %v671
    %v720 = vrsqrt.pop %v672
    %v721 = vrsqrt.pop %v673
    %v722 = vrsqrt.pop %v674
    %v723 = vrsqrt.pop %v675
    %v724 = vrsqrt.pop %v676
    %v725 = vrsqrt.pop %v677
    %v726 = vrsqrt.pop %v678
    %v727 = vrsqrt.pop %v679
    %v728 = vrsqrt.pop %v680
    %v729 = vrsqrt.pop %v681
    %v730 = vrsqrt.pop %v682
    %v731 = vrsqrt.pop %v683
    %v732 = vrsqrt.pop %v684
    %v733 = vrsqrt.pop %v685
    %v734 = vrsqrt.pop %v686
    %v735 = vrsqrt.pop %v687
    %v736 = vrsqrt.pop %v688
    %v737 = vrsqrt.pop %v689
    %v738 = vrsqrt.pop %v690
    %v739 = vrsqrt.pop %v691
    %v740 = vmul.f32 %v596, %v692
    %v741 = vmul.f32 %v597, %v693
    %v742 = vmul.f32 %v598, %v694
    %v743 = vmul.f32 %v599, %v695
    %v744 = vmul.f32 %v600, %v696
    %v745 = vmul.f32 %v601, %v697
    %v746 = vmul.f32 %v602, %v698
    %v747 = vmul.f32 %v603, %v699
    %v748 = vmul.f32 %v604, %v700
    %v749 = vmul.f32 %v605, %v701
    %v750 = vmul.f32 %v606, %v702
    %v751 = vmul.f32 %v607, %v703
    %v752 = vmul.f32 %v608, %v704
    %v753 = vmul.f32 %v609, %v705
    %v754 = vmul.f32 %v610, %v706
    %v755 = vmul.f32 %v611, %v707
    %v756 = vmul.f32 %v612, %v708
    %v757 = vmul.f32 %v613, %v709
    %v758 = vmul.f32 %v614, %v710
    %v759 = vmul.f32 %v615, %v711
    %v760 = vmul.f32 %v616, %v712
    %v761 = vmul.f32 %v617, %v713
    %v762 = vmul.f32 %v618, %v714
    %v763 = vmul.f32 %v619, %v715
    %v764 = vmul.f32 %v620, %v716
    %v765 = vmul.f32 %v621, %v717
    %v766 = vmul.f32 %v622, %v718
    %v767 = vmul.f32 %v623, %v719
    %v768 = vmul.f32 %v624, %v720
    %v769 = vmul.f32 %v625, %v721
    %v770 = vmul.f32 %v626, %v722
    %v771 = vmul.f32 %v627, %v723
    %v772 = vmul.f32 %v628, %v724
    %v773 = vmul.f32 %v629, %v725
    %v774 = vmul.f32 %v630, %v726
    %v775 = vmul.f32 %v631, %v727
    %v776 = vmul.f32 %v632, %v728
    %v777 = vmul.f32 %v633, %v729
    %v778 = vmul.f32 %v634, %v730
    %v779 = vmul.f32 %v635, %v731
    %v780 = vmul.f32 %v636, %v732
    %v781 = vmul.f32 %v637, %v733
    %v782 = vmul.f32 %v638, %v734
    %v783 = vmul.f32 %v639, %v735
    %v784 = vmul.f32 %v640, %v736
    %v785 = vmul.f32 %v641, %v737
    %v786 = vmul.f32 %v642, %v738
    %v787 = vmul.f32 %v643, %v739
    %788 = vst.msk [vmem:[%s2] sm:$0xff] %vm544, %v740
    %789 = vst.msk [vmem:[%s2 + $0x8] sm:$0xff] %vm544, %v741
    %790 = vst.msk [vmem:[%s2 + $0x10] sm:$0xff] %vm544, %v742
    %791 = vst.msk [vmem:[%s2 + $0x18] sm:$0xff] %vm544, %v743
    %792 = vst.msk [vmem:[%s2 + $0x20] sm:$0xff] %vm544, %v744
    %793 = vst.msk [vmem:[%s2 + $0x28] sm:$0xff] %vm544, %v745
    %794 = vst.msk [vmem:[%s2 + $0x30] sm:$0xff] %vm544, %v746
    %795 = vst.msk [vmem:[%s2 + $0x38] sm:$0xff] %vm544, %v747
    %796 = vst.msk [vmem:[%s2 + $0x40] sm:$0xff] %vm544, %v748
    %797 = vst.msk [vmem:[%s2 + $0x48] sm:$0xff] %vm544, %v749
    %798 = vst.msk [vmem:[%s2 + $0x50] sm:$0xff] %vm544, %v750
    %799 = vst.msk [vmem:[%s2 + $0x58] sm:$0xff] %vm544, %v751
    %800 = vst.msk [vmem:[%s2 + $0x60] sm:$0xff] %vm544, %v752
    %801 = vst.msk [vmem:[%s2 + $0x68] sm:$0xff] %vm544, %v753
    %802 = vst.msk [vmem:[%s2 + $0x70] sm:$0xff] %vm544, %v754
    %803 = vst.msk [vmem:[%s2 + $0x78] sm:$0xff] %vm544, %v755
    %804 = vst.msk [vmem:[%s2 + $0x80] sm:$0xff] %vm544, %v756
    %805 = vst.msk [vmem:[%s2 + $0x88] sm:$0xff] %vm544, %v757
    %806 = vst.msk [vmem:[%s2 + $0x90] sm:$0xff] %vm544, %v758
    %807 = vst.msk [vmem:[%s2 + $0x98] sm:$0xff] %vm544, %v759
    %808 = vst.msk [vmem:[%s2 + $0xa0] sm:$0xff] %vm544, %v760
    %809 = vst.msk [vmem:[%s2 + $0xa8] sm:$0xff] %vm544, %v761
    %810 = vst.msk [vmem:[%s2 + $0xb0] sm:$0xff] %vm544, %v762
    %811 = vst.msk [vmem:[%s2 + $0xb8] sm:$0xff] %vm544, %v763
    %812 = vst.msk [vmem:[%s2 + $0xc0] sm:$0xff] %vm544, %v764
    %813 = vst.msk [vmem:[%s2 + $0xc8] sm:$0xff] %vm544, %v765
    %814 = vst.msk [vmem:[%s2 + $0xd0] sm:$0xff] %vm544, %v766
    %815 = vst.msk [vmem:[%s2 + $0xd8] sm:$0xff] %vm544, %v767
    %816 = vst.msk [vmem:[%s2 + $0xe0] sm:$0xff] %vm544, %v768
    %817 = vst.msk [vmem:[%s2 + $0xe8] sm:$0xff] %vm544, %v769
    %818 = vst.msk [vmem:[%s2 + $0xf0] sm:$0xff] %vm544, %v770
    %819 = vst.msk [vmem:[%s2 + $0xf8] sm:$0xff] %vm544, %v771
    %820 = vst.msk [vmem:[%s2 + $0x100] sm:$0xff] %vm544, %v772
    %821 = vst.msk [vmem:[%s2 + $0x108] sm:$0xff] %vm544, %v773
    %822 = vst.msk [vmem:[%s2 + $0x110] sm:$0xff] %vm544, %v774
    %823 = vst.msk [vmem:[%s2 + $0x118] sm:$0xff] %vm544, %v775
    %824 = vst.msk [vmem:[%s2 + $0x120] sm:$0xff] %vm544, %v776
    %825 = vst.msk [vmem:[%s2 + $0x128] sm:$0xff] %vm544, %v777
    %826 = vst.msk [vmem:[%s2 + $0x130] sm:$0xff] %vm544, %v778
    %827 = vst.msk [vmem:[%s2 + $0x138] sm:$0xff] %vm544, %v779
    %828 = vst.msk [vmem:[%s2 + $0x140] sm:$0xff] %vm544, %v780
    %829 = vst.msk [vmem:[%s2 + $0x148] sm:$0xff] %vm544, %v781
    %830 = vst.msk [vmem:[%s2 + $0x150] sm:$0xff] %vm544, %v782
    %831 = vst.msk [vmem:[%s2 + $0x158] sm:$0xff] %vm544, %v783
    %832 = vst.msk [vmem:[%s2 + $0x160] sm:$0xff] %vm544, %v784
    %833 = vst.msk [vmem:[%s2 + $0x168] sm:$0xff] %vm544, %v785
    %834 = vst.msk [vmem:[%s2 + $0x170] sm:$0xff] %vm544, %v786
    %835 = vst.msk [vmem:[%s2 + $0x178] sm:$0xff] %vm544, %v787
  $region17: #{tpu_custom_call.1} parent=0 // pred_fallthru
    _
  // Predicated region
  $region18: #{tpu_custom_call.1} parent=0 // pred_check
    _
  $region19: #{tpu_custom_call.1} parent=0 // pred_check_branch
    %837 = sbr.rel (0) target = $region21
  $region20: #{tpu_custom_call.1} parent=0 // pred_region
    _
  $region21: #{tpu_custom_call.1} parent=0 // pred_fallthru
    _
  // Predicated region
  $region22: #{tpu_custom_call.1} parent=0 // pred_check
    _
  $region23: #{tpu_custom_call.1} parent=0 // pred_check_branch
    %839 = sbr.rel (0) target = $region25
  $region24: #{tpu_custom_call.1} parent=0 // pred_region
    _
  $region25: #{tpu_custom_call.1} parent=0 // pred_fallthru
    _

</llo_original>
